<compile_context>
chip_gen: v6e
topology: v6e:2x2x1
jax: 0.10.0
libtpu: 0.0.40
codegen_flags: <defaults>
</compile_context>

<pallas_src>
import jax
import jax.numpy as jnp
from jax.experimental import pallas as pl
from jax.experimental.pallas import tpu as pltpu

# Model dims (input: 6 facial points x 2 coords = 12, output: 3 angles)
INPUT_DIM = 12
OUTPUT_DIM = 3
HIDDEN = [256, 128, 64, 32, 16]
OUT_PAD = 128  # lane-dense padded output width (real outputs live in cols 0..2)


def _round_up(n, m):
    return ((n + m - 1) // m) * m


def mlp_kernel(x_ref,
               w1_ref, b1_ref, w2_ref, b2_ref, w3_ref, b3_ref,
               w4_ref, b4_ref, w5_ref, b5_ref, w6_ref, b6_ref,
               o_ref):
    h = x_ref[...].astype(jnp.float32)

    def linear(h, w_ref, b_ref):
        # MXU-native bf16 x bf16 -> f32 accumulation; bias add in f32.
        y = jnp.dot(h.astype(jnp.bfloat16), w_ref[...],
                    preferred_element_type=jnp.float32)
        return y + b_ref[...]          # b is (1, out) -> broadcasts over batch

    h = jnp.maximum(linear(h, w1_ref, b1_ref), 0.0)
    h = jnp.maximum(linear(h, w2_ref, b2_ref), 0.0)
    h = jnp.maximum(linear(h, w3_ref, b3_ref), 0.0)
    h = jnp.maximum(linear(h, w4_ref, b4_ref), 0.0)
    h = jnp.maximum(linear(h, w5_ref, b5_ref), 0.0)

    # Final layer: linear (padded to 128 lanes) + sigmoid.
    y = linear(h, w6_ref, b6_ref)
    # sigmoid = 1 / (1 + exp(-y)): exp and the approximate reciprocal both run
    # on the EUP slot, keeping the VPU free.
    y = pl.reciprocal(1.0 + jnp.exp(-y), approx=True)

    o_ref[...] = y.astype(o_ref.dtype)


def mlp_forward(x, params, *, batch_tile=None):
    """x: [B, INPUT_DIM] float32. params: list of (W [in,out], b [1,out])."""
    B, D = x.shape
    assert D == INPUT_DIM

    # Tile choice: big batches -> 512-row tiles (multiple of 128 and 256, so
    # MXU-aligned on v5e/v6e/v7x); small batches -> one grid step.
    if batch_tile is None:
        batch_tile = 512 if B > 512 else max(8, _round_up(B, 8))
    batch_tile = max(8, _round_up(batch_tile, 8))

    B_pad = _round_up(B, batch_tile)
    if B_pad != B:
        x = jnp.pad(x, ((0, B_pad - B), (0, 0)))

    # Weights -> bf16 (MXU native), biases stay f32. The final layer is
    # zero-padded to OUT_PAD columns so the output store is lane-dense.
    flat_params = []
    n_layers = len(params)
    for li, (w, b) in enumerate(params):
        if li == n_layers - 1:
            w = jnp.pad(w, ((0, 0), (0, OUT_PAD - w.shape[1])))
            b = jnp.pad(b, ((0, 0), (0, OUT_PAD - b.shape[1])))
        flat_params.append(w.astype(jnp.bfloat16))
        flat_params.append(b.astype(jnp.float32))

    # x / output tiled over batch; every weight/bias is a full block with a
    # constant index map (block (0, 0)) so it stays resident in VMEM.
    full = lambda arr: pl.BlockSpec(arr.shape, lambda i: (0, 0))

    in_specs = [pl.BlockSpec((batch_tile, INPUT_DIM), lambda i: (i, 0))]
    in_specs += [full(p) for p in flat_params]
    out_spec = pl.BlockSpec((batch_tile, OUT_PAD), lambda i: (i, 0))

    out = pl.pallas_call(
        mlp_kernel,
        out_shape=jax.ShapeDtypeStruct((B_pad, OUT_PAD), jnp.float32),
        grid_spec=pl.GridSpec(
            grid=(B_pad // batch_tile,),
            in_specs=in_specs,
            out_specs=out_spec,
        ),
        compiler_params=pltpu.CompilerParams(
            dimension_semantics=("parallel",)),
    )(x, *flat_params)

    return out[:B, :OUTPUT_DIM]


def init_params(key):
    """Deterministic init matching nn.Linear shapes (stored as [in, out])."""
    dims = [INPUT_DIM] + HIDDEN + [OUTPUT_DIM]
    params = []
    for din, dout in zip(dims[:-1], dims[1:]):
        kw, kb, key = jax.random.split(key, 3)
        bound = 1.0 / jnp.sqrt(din)
        w = jax.random.uniform(kw, (din, dout), jnp.float32, -bound, bound)
        b = jax.random.uniform(kb, (1, dout), jnp.float32, -bound, bound)
        params.append((w, b))
    return params


def mlp_reference(x, params):
    """Pure-JAX reference mimicking the kernel's bf16-matmul / f32-accum path."""
    h = x.astype(jnp.float32)
    n = len(params)
    for i, (w, b) in enumerate(params):
        h_bf = h.astype(jnp.bfloat16).astype(jnp.float32)
        w_bf = w.astype(jnp.bfloat16).astype(jnp.float32)
        y = h_bf @ w_bf + b
        h = jnp.maximum(y, 0.0) if i < n - 1 else jax.nn.sigmoid(y)
    return h


if __name__ == "__main__":
    key = jax.random.PRNGKey(0)
    kx, kp = jax.random.split(key)
    params = init_params(kp)

    # Small batch: single grid step (no divisibility requirement).
    B = 8
    x = jax.random.uniform(kx, (B, INPUT_DIM), jnp.float32)  # MinMax-scaled-like inputs in [0,1]
    out = jax.block_until_ready(mlp_forward(x, params))
    ref = mlp_reference(x, params)
    assert out.shape == (B, OUTPUT_DIM)
    # Tolerance absorbs the EUP approximate-reciprocal in the sigmoid.
    assert jnp.allclose(out, ref, atol=1e-3, rtol=1e-3), "mismatch vs reference (B=8)"

    # Non-multiple batch with an explicit tile: exercises batch padding and a
    # multi-step "parallel" grid (sharded across TCs on v7x).
    B2 = 300
    x2 = jax.random.uniform(kx, (B2, INPUT_DIM), jnp.float32)
    out2 = jax.block_until_ready(mlp_forward(x2, params, batch_tile=128))
    ref2 = mlp_reference(x2, params)
    assert out2.shape == (B2, OUTPUT_DIM)
    assert jnp.allclose(out2, ref2, atol=1e-3, rtol=1e-3), "mismatch vs reference (B=300)"

    print("KERNEL_OK")
</pallas_src>

<mosaic_0001>
module attributes {stable_mosaic.version = 11 : i64} {
  func.func @mlp_kernel(%arg0: i32, %arg1: memref<8x12xf32, #tpu.memory_space<vmem>>, %arg2: memref<12x256xbf16, #tpu.memory_space<vmem>>, %arg3: memref<1x256xf32, #tpu.memory_space<vmem>>, %arg4: memref<256x128xbf16, #tpu.memory_space<vmem>>, %arg5: memref<1x128xf32, #tpu.memory_space<vmem>>, %arg6: memref<128x64xbf16, #tpu.memory_space<vmem>>, %arg7: memref<1x64xf32, #tpu.memory_space<vmem>>, %arg8: memref<64x32xbf16, #tpu.memory_space<vmem>>, %arg9: memref<1x32xf32, #tpu.memory_space<vmem>>, %arg10: memref<32x16xbf16, #tpu.memory_space<vmem>>, %arg11: memref<1x16xf32, #tpu.memory_space<vmem>>, %arg12: memref<16x128xbf16, #tpu.memory_space<vmem>>, %arg13: memref<1x128xf32, #tpu.memory_space<vmem>>, %arg14: memref<8x128xf32, #tpu.memory_space<vmem>>) attributes {dimension_semantics = [#tpu.dimension_semantics<parallel>], iteration_bounds = array<i64: 1>, scalar_prefetch = 0 : i64, scratch_operands = 0 : i64, tpu.core_type = #tpu.core_type<tc>, window_params = [{transform_indices = @transform_0, window_bounds = array<i64: 8, 12>}, {pipeline_mode = #tpu.pipeline_mode<synchronous>, transform_indices = @transform_1, window_bounds = array<i64: 12, 256>}, {pipeline_mode = #tpu.pipeline_mode<synchronous>, transform_indices = @transform_2, window_bounds = array<i64: 1, 256>}, {pipeline_mode = #tpu.pipeline_mode<synchronous>, transform_indices = @transform_3, window_bounds = array<i64: 256, 128>}, {pipeline_mode = #tpu.pipeline_mode<synchronous>, transform_indices = @transform_4, window_bounds = array<i64: 1, 128>}, {pipeline_mode = #tpu.pipeline_mode<synchronous>, transform_indices = @transform_5, window_bounds = array<i64: 128, 64>}, {pipeline_mode = #tpu.pipeline_mode<synchronous>, transform_indices = @transform_6, window_bounds = array<i64: 1, 64>}, {pipeline_mode = #tpu.pipeline_mode<synchronous>, transform_indices = @transform_7, window_bounds = array<i64: 64, 32>}, {pipeline_mode = #tpu.pipeline_mode<synchronous>, transform_indices = @transform_8, window_bounds = array<i64: 1, 32>}, {pipeline_mode = #tpu.pipeline_mode<synchronous>, transform_indices = @transform_9, window_bounds = array<i64: 32, 16>}, {pipeline_mode = #tpu.pipeline_mode<synchronous>, transform_indices = @transform_10, window_bounds = array<i64: 1, 16>}, {pipeline_mode = #tpu.pipeline_mode<synchronous>, transform_indices = @transform_11, window_bounds = array<i64: 16, 128>}, {pipeline_mode = #tpu.pipeline_mode<synchronous>, transform_indices = @transform_12, window_bounds = array<i64: 1, 128>}, {transform_indices = @transform_13, window_bounds = array<i64: 8, 128>}]} {
    %c0 = arith.constant 0 : index
    %c0_0 = arith.constant 0 : index
    %0 = vector.load %arg1[%c0, %c0_0] : memref<8x12xf32, #tpu.memory_space<vmem>>, vector<8x12xf32>
    %1 = arith.truncf %0 : vector<8x12xf32> to vector<8x12xbf16>
    %c0_1 = arith.constant 0 : index
    %c0_2 = arith.constant 0 : index
    %2 = vector.load %arg2[%c0_1, %c0_2] : memref<12x256xbf16, #tpu.memory_space<vmem>>, vector<12x256xbf16>
    %cst = arith.constant dense<0.000000e+00> : vector<8x256xf32>
    %3 = tpu.matmul %1, %2, %cst {dimension_numbers = #tpu.dot_dimension_numbers<[1], [0], [0], [1], [0, 0, 1, 1], [], []>} : vector<8x12xbf16>, vector<12x256xbf16>, vector<8x256xf32> -> vector<8x256xf32>
    %c0_3 = arith.constant 0 : index
    %c0_4 = arith.constant 0 : index
    %4 = vector.load %arg3[%c0_3, %c0_4] : memref<1x256xf32, #tpu.memory_space<vmem>>, vector<1x256xf32>
    %5 = vector.broadcast %4 : vector<1x256xf32> to vector<8x256xf32>
    %6 = arith.addf %3, %5 : vector<8x256xf32>
    %cst_5 = arith.constant 0.000000e+00 : f32
    %7 = vector.broadcast %cst_5 : f32 to vector<8x256xf32>
    %8 = arith.maximumf %6, %7 : vector<8x256xf32>
    %9 = arith.truncf %8 : vector<8x256xf32> to vector<8x256xbf16>
    %c0_6 = arith.constant 0 : index
    %c0_7 = arith.constant 0 : index
    %10 = vector.load %arg4[%c0_6, %c0_7] : memref<256x128xbf16, #tpu.memory_space<vmem>>, vector<256x128xbf16>
    %cst_8 = arith.constant dense<0.000000e+00> : vector<8x128xf32>
    %11 = tpu.matmul %9, %10, %cst_8 {dimension_numbers = #tpu.dot_dimension_numbers<[1], [0], [0], [1], [0, 0, 1, 1], [], []>} : vector<8x256xbf16>, vector<256x128xbf16>, vector<8x128xf32> -> vector<8x128xf32>
    %c0_9 = arith.constant 0 : index
    %c0_10 = arith.constant 0 : index
    %12 = vector.load %arg5[%c0_9, %c0_10] : memref<1x128xf32, #tpu.memory_space<vmem>>, vector<1x128xf32>
    %13 = vector.broadcast %12 : vector<1x128xf32> to vector<8x128xf32>
    %14 = arith.addf %11, %13 : vector<8x128xf32>
    %cst_11 = arith.constant 0.000000e+00 : f32
    %15 = vector.broadcast %cst_11 : f32 to vector<8x128xf32>
    %16 = arith.maximumf %14, %15 : vector<8x128xf32>
    %17 = arith.truncf %16 : vector<8x128xf32> to vector<8x128xbf16>
    %c0_12 = arith.constant 0 : index
    %c0_13 = arith.constant 0 : index
    %18 = vector.load %arg6[%c0_12, %c0_13] : memref<128x64xbf16, #tpu.memory_space<vmem>>, vector<128x64xbf16>
    %cst_14 = arith.constant dense<0.000000e+00> : vector<8x64xf32>
    %19 = tpu.matmul %17, %18, %cst_14 {dimension_numbers = #tpu.dot_dimension_numbers<[1], [0], [0], [1], [0, 0, 1, 1], [], []>} : vector<8x128xbf16>, vector<128x64xbf16>, vector<8x64xf32> -> vector<8x64xf32>
    %c0_15 = arith.constant 0 : index
    %c0_16 = arith.constant 0 : index
    %20 = vector.load %arg7[%c0_15, %c0_16] : memref<1x64xf32, #tpu.memory_space<vmem>>, vector<1x64xf32>
    %21 = vector.broadcast %20 : vector<1x64xf32> to vector<8x64xf32>
    %22 = arith.addf %19, %21 : vector<8x64xf32>
    %cst_17 = arith.constant 0.000000e+00 : f32
    %23 = vector.broadcast %cst_17 : f32 to vector<8x64xf32>
    %24 = arith.maximumf %22, %23 : vector<8x64xf32>
    %25 = arith.truncf %24 : vector<8x64xf32> to vector<8x64xbf16>
    %c0_18 = arith.constant 0 : index
    %c0_19 = arith.constant 0 : index
    %26 = vector.load %arg8[%c0_18, %c0_19] : memref<64x32xbf16, #tpu.memory_space<vmem>>, vector<64x32xbf16>
    %cst_20 = arith.constant dense<0.000000e+00> : vector<8x32xf32>
    %27 = tpu.matmul %25, %26, %cst_20 {dimension_numbers = #tpu.dot_dimension_numbers<[1], [0], [0], [1], [0, 0, 1, 1], [], []>} : vector<8x64xbf16>, vector<64x32xbf16>, vector<8x32xf32> -> vector<8x32xf32>
    %c0_21 = arith.constant 0 : index
    %c0_22 = arith.constant 0 : index
    %28 = vector.load %arg9[%c0_21, %c0_22] : memref<1x32xf32, #tpu.memory_space<vmem>>, vector<1x32xf32>
    %29 = vector.broadcast %28 : vector<1x32xf32> to vector<8x32xf32>
    %30 = arith.addf %27, %29 : vector<8x32xf32>
    %cst_23 = arith.constant 0.000000e+00 : f32
    %31 = vector.broadcast %cst_23 : f32 to vector<8x32xf32>
    %32 = arith.maximumf %30, %31 : vector<8x32xf32>
    %33 = arith.truncf %32 : vector<8x32xf32> to vector<8x32xbf16>
    %c0_24 = arith.constant 0 : index
    %c0_25 = arith.constant 0 : index
    %34 = vector.load %arg10[%c0_24, %c0_25] : memref<32x16xbf16, #tpu.memory_space<vmem>>, vector<32x16xbf16>
    %cst_26 = arith.constant dense<0.000000e+00> : vector<8x16xf32>
    %35 = tpu.matmul %33, %34, %cst_26 {dimension_numbers = #tpu.dot_dimension_numbers<[1], [0], [0], [1], [0, 0, 1, 1], [], []>} : vector<8x32xbf16>, vector<32x16xbf16>, vector<8x16xf32> -> vector<8x16xf32>
    %c0_27 = arith.constant 0 : index
    %c0_28 = arith.constant 0 : index
    %36 = vector.load %arg11[%c0_27, %c0_28] : memref<1x16xf32, #tpu.memory_space<vmem>>, vector<1x16xf32>
    %37 = vector.broadcast %36 : vector<1x16xf32> to vector<8x16xf32>
    %38 = arith.addf %35, %37 : vector<8x16xf32>
    %cst_29 = arith.constant 0.000000e+00 : f32
    %39 = vector.broadcast %cst_29 : f32 to vector<8x16xf32>
    %40 = arith.maximumf %38, %39 : vector<8x16xf32>
    %41 = arith.truncf %40 : vector<8x16xf32> to vector<8x16xbf16>
    %c0_30 = arith.constant 0 : index
    %c0_31 = arith.constant 0 : index
    %42 = vector.load %arg12[%c0_30, %c0_31] : memref<16x128xbf16, #tpu.memory_space<vmem>>, vector<16x128xbf16>
    %cst_32 = arith.constant dense<0.000000e+00> : vector<8x128xf32>
    %43 = tpu.matmul %41, %42, %cst_32 {dimension_numbers = #tpu.dot_dimension_numbers<[1], [0], [0], [1], [0, 0, 1, 1], [], []>} : vector<8x16xbf16>, vector<16x128xbf16>, vector<8x128xf32> -> vector<8x128xf32>
    %c0_33 = arith.constant 0 : index
    %c0_34 = arith.constant 0 : index
    %44 = vector.load %arg13[%c0_33, %c0_34] : memref<1x128xf32, #tpu.memory_space<vmem>>, vector<1x128xf32>
    %45 = vector.broadcast %44 : vector<1x128xf32> to vector<8x128xf32>
    %46 = arith.addf %43, %45 : vector<8x128xf32>
    %cst_35 = arith.constant 0.000000e+00 : f32
    %47 = vector.broadcast %cst_35 : f32 to vector<8x128xf32>
    %48 = arith.subf %47, %46 : vector<8x128xf32>
    %49 = math.exp %48 : vector<8x128xf32>
    %cst_36 = arith.constant 1.000000e+00 : f32
    %50 = vector.broadcast %cst_36 : f32 to vector<8x128xf32>
    %51 = arith.addf %50, %49 : vector<8x128xf32>
    %52 = tpu.reciprocal %51 {approx = true} : vector<8x128xf32> -> vector<8x128xf32>
    %c0_37 = arith.constant 0 : index
    %c0_38 = arith.constant 0 : index
    %53 = vector.load %arg14[%c0_37, %c0_38] : memref<8x128xf32, #tpu.memory_space<vmem>>, vector<8x128xf32>
    tpu.vector_store %arg14[%c0_37, %c0_38], %52 {strides = array<i32>} : memref<8x128xf32, #tpu.memory_space<vmem>>, vector<8x128xf32>,
    return
  }
  func.func @transform_0(%arg0: i32) -> (i32, i32) {
    %c0_i32 = arith.constant 0 : i32
    %c0_i32_0 = arith.constant 0 : i32
    return %arg0, %c0_i32 : i32, i32
  }
  func.func @transform_1(%arg0: i32) -> (i32, i32) {
    %c0_i32 = arith.constant 0 : i32
    %c0_i32_0 = arith.constant 0 : i32
    %c0_i32_1 = arith.constant 0 : i32
    return %c0_i32, %c0_i32_0 : i32, i32
  }
  func.func @transform_2(%arg0: i32) -> (i32, i32) {
    %c0_i32 = arith.constant 0 : i32
    %c0_i32_0 = arith.constant 0 : i32
    %c0_i32_1 = arith.constant 0 : i32
    return %c0_i32, %c0_i32_0 : i32, i32
  }
  func.func @transform_3(%arg0: i32) -> (i32, i32) {
    %c0_i32 = arith.constant 0 : i32
    %c0_i32_0 = arith.constant 0 : i32
    %c0_i32_1 = arith.constant 0 : i32
    return %c0_i32, %c0_i32_0 : i32, i32
  }
  func.func @transform_4(%arg0: i32) -> (i32, i32) {
    %c0_i32 = arith.constant 0 : i32
    %c0_i32_0 = arith.constant 0 : i32
    %c0_i32_1 = arith.constant 0 : i32
    return %c0_i32, %c0_i32_0 : i32, i32
  }
  func.func @transform_5(%arg0: i32) -> (i32, i32) {
    %c0_i32 = arith.constant 0 : i32
    %c0_i32_0 = arith.constant 0 : i32
    %c0_i32_1 = arith.constant 0 : i32
    return %c0_i32, %c0_i32_0 : i32, i32
  }
  func.func @transform_6(%arg0: i32) -> (i32, i32) {
    %c0_i32 = arith.constant 0 : i32
    %c0_i32_0 = arith.constant 0 : i32
    %c0_i32_1 = arith.constant 0 : i32
    return %c0_i32, %c0_i32_0 : i32, i32
  }
  func.func @transform_7(%arg0: i32) -> (i32, i32) {
    %c0_i32 = arith.constant 0 : i32
    %c0_i32_0 = arith.constant 0 : i32
    %c0_i32_1 = arith.constant 0 : i32
    return %c0_i32, %c0_i32_0 : i32, i32
  }
  func.func @transform_8(%arg0: i32) -> (i32, i32) {
    %c0_i32 = arith.constant 0 : i32
    %c0_i32_0 = arith.constant 0 : i32
    %c0_i32_1 = arith.constant 0 : i32
    return %c0_i32, %c0_i32_0 : i32, i32
  }
  func.func @transform_9(%arg0: i32) -> (i32, i32) {
    %c0_i32 = arith.constant 0 : i32
    %c0_i32_0 = arith.constant 0 : i32
    %c0_i32_1 = arith.constant 0 : i32
    return %c0_i32, %c0_i32_0 : i32, i32
  }
  func.func @transform_10(%arg0: i32) -> (i32, i32) {
    %c0_i32 = arith.constant 0 : i32
    %c0_i32_0 = arith.constant 0 : i32
    %c0_i32_1 = arith.constant 0 : i32
    return %c0_i32, %c0_i32_0 : i32, i32
  }
  func.func @transform_11(%arg0: i32) -> (i32, i32) {
    %c0_i32 = arith.constant 0 : i32
    %c0_i32_0 = arith.constant 0 : i32
    %c0_i32_1 = arith.constant 0 : i32
    return %c0_i32, %c0_i32_0 : i32, i32
  }
  func.func @transform_12(%arg0: i32) -> (i32, i32) {
    %c0_i32 = arith.constant 0 : i32
    %c0_i32_0 = arith.constant 0 : i32
    %c0_i32_1 = arith.constant 0 : i32
    return %c0_i32, %c0_i32_0 : i32, i32
  }
  func.func @transform_13(%arg0: i32) -> (i32, i32) {
    %c0_i32 = arith.constant 0 : i32
    %c0_i32_0 = arith.constant 0 : i32
    return %arg0, %c0_i32 : i32, i32
  }
}

</mosaic_0001>

<llo_original>
// kernel: tpu_custom_call.1
$region0: #{tpu_custom_call.1}
  #allocation0 [shape = 'u32[]', space=smem, size = 0x4, offset = 0x4, fixed_abs, tag = 'smem constant byte address 0x4 - core index']
  #allocation1 [shape = 'u32[144,128]{1,0:T(1,128)}', space=vmem, size = 0x12000, scoped, tag = 'internal scratch']
  %s0 = inlined_call_operand.hbm [shape: f32[8,12], index: 0, kind: input, shape index: {}]
  %s1 = inlined_call_operand.hbm [shape: bf16[12,256], index: 1, kind: input, shape index: {}]
  %s2 = inlined_call_operand.hbm [shape: f32[1,256], index: 2, kind: input, shape index: {}]
  %s3 = inlined_call_operand.vmem [shape: bf16[256,128], index: 3, kind: input, shape index: {}]
  %s4 = inlined_call_operand.hbm [shape: f32[1,128], index: 4, kind: input, shape index: {}]
  %s5 = inlined_call_operand.vmem [shape: bf16[128,64], index: 5, kind: input, shape index: {}]
  %s6 = inlined_call_operand.hbm [shape: f32[1,64], index: 6, kind: input, shape index: {}]
  %s7 = inlined_call_operand.vmem [shape: bf16[64,32], index: 7, kind: input, shape index: {}]
  %s8 = inlined_call_operand.hbm [shape: f32[1,32], index: 8, kind: input, shape index: {}]
  %s9 = inlined_call_operand.vmem [shape: bf16[32,16], index: 9, kind: input, shape index: {}]
  %s10 = inlined_call_operand.vmem [shape: f32[1,16], index: 10, kind: input, shape index: {}]
  %s11 = inlined_call_operand.hbm [shape: bf16[16,128], index: 11, kind: input, shape index: {}]
  %s12 = inlined_call_operand.vmem [shape: f32[1,128], index: 12, kind: input, shape index: {}]
  %s13 = inlined_call_operand.hbm [shape: f32[8,128], index: 13, kind: output, shape index: {}]
  %s14 = sld [smem:[#allocation0]]
  $region90: #{tpu_custom_call.1} parent=0
    _
  %s16 = ssub.s32 1, %s14
  %s17 = scalar_select 0, %s16, %s14
  $region1: #{tpu_custom_call.1} parent=0
    #allocation2 [shape = 'u8[4096]{0}', space=vmem, size = 0x1000, scoped, tag = 'input window, operand 0, single buffered']
    #allocation3 [shape = 's32[1]{0}', space=sflag, size = 0x4, scoped, tag = 'scoped memory for tpu_custom_call.1']
    #allocation4 [shape = 's32[1]{0}', space=sflag, size = 0x4, scoped, tag = 'scoped memory for tpu_custom_call.1']
    #allocation5 [shape = 'u8[8192]{0}', space=vmem, size = 0x2000, scoped, tag = 'input window, operand 1, single buffered']
    #allocation6 [shape = 's32[1]{0}', space=sflag, size = 0x4, scoped, tag = 'scoped memory for tpu_custom_call.1']
    #allocation7 [shape = 'u8[1024]{0}', space=vmem, size = 0x400, scoped, tag = 'input window, operand 2, single buffered']
    #allocation8 [shape = 'u8[512]{0}', space=vmem, size = 0x400, scoped, tag = 'input window, operand 4, single buffered']
    #allocation9 [shape = 's32[1]{0}', space=sflag, size = 0x4, scoped, tag = 'scoped memory for tpu_custom_call.1']
    #allocation10 [shape = 'u8[512]{0}', space=vmem, size = 0x400, scoped, tag = 'input window, operand 6, single buffered']
    #allocation11 [shape = 'u8[512]{0}', space=vmem, size = 0x400, scoped, tag = 'input window, operand 8, single buffered']
    #allocation12 [shape = 's32[1]{0}', space=sflag, size = 0x4, scoped, tag = 'scoped memory for tpu_custom_call.1']
    #allocation13 [shape = 'u8[4096]{0}', space=vmem, size = 0x1000, scoped, tag = 'input window, operand 11, single buffered']
    #allocation14 [shape = 'u8[4096]{0}', space=vmem, size = 0x1000, scoped, tag = 'output window, operand 0, single buffered']
    %18 = vsyncpa [#allocation3], 0
    %19 = vsyncpa [#allocation6], 0
    %20 = vsyncpa [#allocation9], 0
    %21 = vsyncpa [#allocation12], 0
    %22 = vsyncpa [#allocation4], 0
    // Predicated region
    $region2: #{tpu_custom_call.1} parent=1 // pred_check
      _
    $region3: #{tpu_custom_call.1} parent=1 // pred_check_branch
      %24 = sbr.rel (0) target = $region5
    $region4: #{tpu_custom_call.1} parent=1 // pred_region
      %s26 = ssub.s32 128, 128
      %27 = vsyncadd [#allocation3], %s26
      %s29 = sshll.u32 [#allocation2], 4
      %s30 = int_to_ptr.vmem [resolvable:$true] %s29
      %32 = dma.hbm_to_vmem [thread:$0]  %s0, 128, %s30, [#allocation3]
    $region5: #{tpu_custom_call.1} parent=1 // pred_fallthru
      _
    // Predicated region
    $region6: #{tpu_custom_call.1} parent=1 // pred_check
      _
    $region7: #{tpu_custom_call.1} parent=1 // pred_check_branch
      %34 = sbr.rel (0) target = $region9
    $region8: #{tpu_custom_call.1} parent=1 // pred_region
      %s36 = ssub.s32 256, 256
      %37 = vsyncadd [#allocation6], %s36
      %s38 = sshll.u32 [#allocation5], 4
      %s39 = int_to_ptr.vmem [resolvable:$true] %s38
      %44 = dma.hbm_to_vmem [thread:$0]  %s1, 256, %s39, [#allocation6], 128, 128, 8
    $region9: #{tpu_custom_call.1} parent=1 // pred_fallthru
      _
    // Predicated region
    $region10: #{tpu_custom_call.1} parent=1 // pred_check
      _
    $region11: #{tpu_custom_call.1} parent=1 // pred_check_branch
      %46 = sbr.rel (0) target = $region13
    $region12: #{tpu_custom_call.1} parent=1 // pred_region
      %s48 = ssub.s32 32, 32
      %49 = vsyncadd [#allocation6], %s48
      %s51 = sshll.u32 [#allocation7], 4
      %s52 = int_to_ptr.vmem [resolvable:$true] %s51
      %54 = dma.hbm_to_vmem [thread:$0]  %s2, 32, %s52, [#allocation6]
    $region13: #{tpu_custom_call.1} parent=1 // pred_fallthru
      _
    // Predicated region
    $region14: #{tpu_custom_call.1} parent=1 // pred_check
      _
    $region15: #{tpu_custom_call.1} parent=1 // pred_check_branch
      %56 = sbr.rel (0) target = $region17
    $region16: #{tpu_custom_call.1} parent=1 // pred_region
      _
    $region17: #{tpu_custom_call.1} parent=1 // pred_fallthru
      _
    // Predicated region
    $region18: #{tpu_custom_call.1} parent=1 // pred_check
      _
    $region19: #{tpu_custom_call.1} parent=1 // pred_check_branch
      %58 = sbr.rel (0) target = $region21
    $region20: #{tpu_custom_call.1} parent=1 // pred_region
      %s60 = ssub.s32 16, 16
      %61 = vsyncadd [#allocation9], %s60
      %s63 = sshll.u32 [#allocation8], 4
      %s64 = int_to_ptr.vmem [resolvable:$true] %s63
      %66 = dma.hbm_to_vmem [thread:$0]  %s4, 16, %s64, [#allocation9]
    $region21: #{tpu_custom_call.1} parent=1 // pred_fallthru
      _
    // Predicated region
    $region22: #{tpu_custom_call.1} parent=1 // pred_check
      _
    $region23: #{tpu_custom_call.1} parent=1 // pred_check_branch
      %68 = sbr.rel (0) target = $region25
    $region24: #{tpu_custom_call.1} parent=1 // pred_region
      _
    $region25: #{tpu_custom_call.1} parent=1 // pred_fallthru
      _
    // Predicated region
    $region26: #{tpu_custom_call.1} parent=1 // pred_check
      _
    $region27: #{tpu_custom_call.1} parent=1 // pred_check_branch
      %70 = sbr.rel (0) target = $region29
    $region28: #{tpu_custom_call.1} parent=1 // pred_region
      %s72 = ssub.s32 16, 16
      %73 = vsyncadd [#allocation9], %s72
      %s75 = sshll.u32 [#allocation10], 4
      %s76 = int_to_ptr.vmem [resolvable:$true] %s75
      %78 = dma.hbm_to_vmem [thread:$0]  %s6, 16, %s76, [#allocation9]
    $region29: #{tpu_custom_call.1} parent=1 // pred_fallthru
      _
    // Predicated region
    $region30: #{tpu_custom_call.1} parent=1 // pred_check
      _
    $region31: #{tpu_custom_call.1} parent=1 // pred_check_branch
      %80 = sbr.rel (0) target = $region33
    $region32: #{tpu_custom_call.1} parent=1 // pred_region
      _
    $region33: #{tpu_custom_call.1} parent=1 // pred_fallthru
      _
    // Predicated region
    $region34: #{tpu_custom_call.1} parent=1 // pred_check
      _
    $region35: #{tpu_custom_call.1} parent=1 // pred_check_branch
      %82 = sbr.rel (0) target = $region37
    $region36: #{tpu_custom_call.1} parent=1 // pred_region
      %s84 = ssub.s32 16, 16
      %85 = vsyncadd [#allocation12], %s84
      %s87 = sshll.u32 [#allocation11], 4
      %s88 = int_to_ptr.vmem [resolvable:$true] %s87
      %90 = dma.hbm_to_vmem [thread:$0]  %s8, 16, %s88, [#allocation12]
    $region37: #{tpu_custom_call.1} parent=1 // pred_fallthru
      _
    // Predicated region
    $region38: #{tpu_custom_call.1} parent=1 // pred_check
      _
    $region39: #{tpu_custom_call.1} parent=1 // pred_check_branch
      %92 = sbr.rel (0) target = $region41
    $region40: #{tpu_custom_call.1} parent=1 // pred_region
      _
    $region41: #{tpu_custom_call.1} parent=1 // pred_fallthru
      _
    // Predicated region
    $region42: #{tpu_custom_call.1} parent=1 // pred_check
      _
    $region43: #{tpu_custom_call.1} parent=1 // pred_check_branch
      %94 = sbr.rel (0) target = $region45
    $region44: #{tpu_custom_call.1} parent=1 // pred_region
      _
    $region45: #{tpu_custom_call.1} parent=1 // pred_fallthru
      _
    // Predicated region
    $region46: #{tpu_custom_call.1} parent=1 // pred_check
      _
    $region47: #{tpu_custom_call.1} parent=1 // pred_check_branch
      %96 = sbr.rel (0) target = $region49
    $region48: #{tpu_custom_call.1} parent=1 // pred_region
      %s98 = ssub.s32 128, 128
      %99 = vsyncadd [#allocation12], %s98
      %s100 = sshll.u32 [#allocation13], 4
      %s101 = int_to_ptr.vmem [resolvable:$true] %s100
      %106 = dma.hbm_to_vmem [thread:$0]  %s11, 128, %s101, [#allocation12], 64, 64, 4
    $region49: #{tpu_custom_call.1} parent=1 // pred_fallthru
      _
    // Predicated region
    $region50: #{tpu_custom_call.1} parent=1 // pred_check
      _
    $region51: #{tpu_custom_call.1} parent=1 // pred_check_branch
      %108 = sbr.rel (0) target = $region53
    $region52: #{tpu_custom_call.1} parent=1 // pred_region
      _
    $region53: #{tpu_custom_call.1} parent=1 // pred_fallthru
      _
    // Predicated region
    $region54: #{tpu_custom_call.1} parent=1 // pred_check
      _
    $region55: #{tpu_custom_call.1} parent=1 // pred_check_branch
      %110 = sbr.rel (0) target = $region57
    $region56: #{tpu_custom_call.1} parent=1 // pred_region
      %111 = dma.done [#allocation3], 128
    $region57: #{tpu_custom_call.1} parent=1 // pred_fallthru
      _
    // Predicated region
    $region58: #{tpu_custom_call.1} parent=1 // pred_check
      _
    $region59: #{tpu_custom_call.1} parent=1 // pred_check_branch
      %113 = sbr.rel (0) target = $region61
    $region60: #{tpu_custom_call.1} parent=1 // pred_region
      %114 = dma.done [#allocation6], 256
    $region61: #{tpu_custom_call.1} parent=1 // pred_fallthru
      _
    // Predicated region
    $region62: #{tpu_custom_call.1} parent=1 // pred_check
      _
    $region63: #{tpu_custom_call.1} parent=1 // pred_check_branch
      %116 = sbr.rel (0) target = $region65
    $region64: #{tpu_custom_call.1} parent=1 // pred_region
      %117 = dma.done [#allocation6], 32
    $region65: #{tpu_custom_call.1} parent=1 // pred_fallthru
      _
    // Predicated region
    $region66: #{tpu_custom_call.1} parent=1 // pred_check
      _
    $region67: #{tpu_custom_call.1} parent=1 // pred_check_branch
      %119 = sbr.rel (0) target = $region69
    $region68: #{tpu_custom_call.1} parent=1 // pred_region
      %120 = dma.done [#allocation9], 16
    $region69: #{tpu_custom_call.1} parent=1 // pred_fallthru
      _
    // Predicated region
    $region70: #{tpu_custom_call.1} parent=1 // pred_check
      _
    $region71: #{tpu_custom_call.1} parent=1 // pred_check_branch
      %122 = sbr.rel (0) target = $region73
    $region72: #{tpu_custom_call.1} parent=1 // pred_region
      %123 = dma.done [#allocation9], 16
    $region73: #{tpu_custom_call.1} parent=1 // pred_fallthru
      _
    // Predicated region
    $region74: #{tpu_custom_call.1} parent=1 // pred_check
      _
    $region75: #{tpu_custom_call.1} parent=1 // pred_check_branch
      %125 = sbr.rel (0) target = $region77
    $region76: #{tpu_custom_call.1} parent=1 // pred_region
      %126 = dma.done [#allocation12], 16
    $region77: #{tpu_custom_call.1} parent=1 // pred_fallthru
      _
    // Predicated region
    $region78: #{tpu_custom_call.1} parent=1 // pred_check
      _
    $region79: #{tpu_custom_call.1} parent=1 // pred_check_branch
      %128 = sbr.rel (0) target = $region81
    $region80: #{tpu_custom_call.1} parent=1 // pred_region
      %129 = dma.done [#allocation12], 128
    $region81: #{tpu_custom_call.1} parent=1 // pred_fallthru
      _
    %v131 = vld [vmem:[#allocation2] sm:$0xff]
    %v132 = vpack.c.bf16 %v131, %v131
    %v133 = vld [vmem:[#allocation5] sm:$0xff]
    %v134 = vld [vmem:[#allocation5 + $0x8] sm:$0x33]
    %v135 = vld [vmem:[#allocation7] sm:$0x3]
    %v137 = vlaneseq
    %v138 = vshrl.u32 %v137, 7
    %v139 = vsub.s32 0, %v138
    %v140 = vrot.slane %v135, %v139
    %v141 = vlaneseq
    %v142 = vshrl.u32 %v141, 7
    %v143 = vsub.s32 1, %v142
    %v144 = vrot.slane %v135, %v143
    %v149 = vunpack.c.l.b16 %v133
    %v150 = vunpack.c.h.b16 %v133
    %v151 = vunpack.c.l.b16 %v134
    %v152 = vunpack.c.h.b16 %v134
    %v153 = vpack.c.b16 %v151, %v149
    %v154 = vpack.c.b16 %v152, %v150
    %vm155 = vcmask 97280
    %v157 = vsel %vm155, %v132, 0
    %vm159 = vcmask 1045504
    %v161 = vsel %vm159, %v153, 0
    %v164 = vsel %vm159, %v154, 0
    %166 = vmatprep.subr.bf16.mxu0 0
    %167 = vmatpush1.bf16.msra.mxu0 0
    %168 = vmatprep.subr.bf16.mxu0 0
    %169 = vmatpush1.bf16.msra.mxu0 0
    %170 = vmatprep.subr.bf16.mxu0 0
    %171 = vmatpush1.bf16.msra.mxu0 0
    %172 = vmatprep.subr.bf16.mxu0 0
    %173 = vmatpush1.bf16.msra.mxu0 0
    %174 = vmatprep.subr.bf16.mxu0 0
    %175 = vmatpush1.bf16.msra.mxu0 0
    %176 = vmatprep.subr.bf16.mxu0 0
    %177 = vmatpush1.bf16.msra.mxu0 0
    %178 = vmatprep.subr.bf16.mxu0 0
    %179 = vmatpush1.bf16.msra.mxu0 0
    %180 = vmatprep.subr.bf16.mxu0 %v164
    %181 = vmatpush1.bf16.msra.mxu0 %v161
    %182 = vmatprep.subr.bf16.mxu0 0
    %183 = vmatpush2.bf16.msra.mxu0 0
    %184 = vmatprep.subr.bf16.mxu0 0
    %185 = vmatpush2.bf16.msra.mxu0 0
    %186 = vmatprep.subr.bf16.mxu0 0
    %187 = vmatpush2.bf16.msra.mxu0 0
    %188 = vmatprep.subr.bf16.mxu0 0
    %189 = vmatpush2.bf16.msra.mxu0 0
    %190 = vmatprep.subr.bf16.mxu0 0
    %191 = vmatpush2.bf16.msra.mxu0 0
    %192 = vmatprep.subr.bf16.mxu0 0
    %193 = vmatpush2.bf16.msra.mxu0 0
    %194 = vmatprep.subr.bf16.mxu0 0
    %195 = vmatpush2.bf16.msra.mxu0 0
    %196 = vmatprep.subr.bf16.mxu0 0
    %197 = vmatpush2.bf16.msra.mxu0 0
    %198 = vmatprep.mubr.bf16.mxu0 0
    %199 = vmatmul.mubr.bf16.gmra.mxu0 %v157
    %v200 = vpop.f32.mrf.mxu0
    %v201 = vadd.f32 %v140, %v200
    %v202 = vpop.f32.mrf.mxu0
    %v203 = vadd.f32 %v144, %v202
    %v204 = vpop.f32.mrf.mxu0
    %v205 = vpop.f32.mrf.mxu0
    %206 = vdwg.mxu0
    %v207 = vmax.f32 %v201, 0.0
    %v208 = vmax.f32 %v203, 0.0
    %v209 = vpack.c.bf16 %v207, %v207
    %v210 = vpack.c.bf16 %v208, %v208
    %v211 = vld [vmem:[%s3] sm:$0xf]
    %v212 = vld [vmem:[%s3 + $0x4] sm:$0xf]
    %v213 = vld [vmem:[%s3 + $0x8] sm:$0xf]
    %v214 = vld [vmem:[%s3 + $0xc] sm:$0xf]
    %v215 = vld [vmem:[%s3 + $0x10] sm:$0xf]
    %v216 = vld [vmem:[%s3 + $0x14] sm:$0xf]
    %v217 = vld [vmem:[%s3 + $0x18] sm:$0xf]
    %v218 = vld [vmem:[%s3 + $0x1c] sm:$0xf]
    %v219 = vld [vmem:[%s3 + $0x20] sm:$0xf]
    %v220 = vld [vmem:[%s3 + $0x24] sm:$0xf]
    %v221 = vld [vmem:[%s3 + $0x28] sm:$0xf]
    %v222 = vld [vmem:[%s3 + $0x2c] sm:$0xf]
    %v223 = vld [vmem:[%s3 + $0x30] sm:$0xf]
    %v224 = vld [vmem:[%s3 + $0x34] sm:$0xf]
    %v225 = vld [vmem:[%s3 + $0x38] sm:$0xf]
    %v226 = vld [vmem:[%s3 + $0x3c] sm:$0xf]
    %v227 = vld [vmem:[%s3 + $0x40] sm:$0xf]
    %v228 = vld [vmem:[%s3 + $0x44] sm:$0xf]
    %v229 = vld [vmem:[%s3 + $0x48] sm:$0xf]
    %v230 = vld [vmem:[%s3 + $0x4c] sm:$0xf]
    %v231 = vld [vmem:[%s3 + $0x50] sm:$0xf]
    %v232 = vld [vmem:[%s3 + $0x54] sm:$0xf]
    %v233 = vld [vmem:[%s3 + $0x58] sm:$0xf]
    %v234 = vld [vmem:[%s3 + $0x5c] sm:$0xf]
    %v235 = vld [vmem:[%s3 + $0x60] sm:$0xf]
    %v236 = vld [vmem:[%s3 + $0x64] sm:$0xf]
    %v237 = vld [vmem:[%s3 + $0x68] sm:$0xf]
    %v238 = vld [vmem:[%s3 + $0x6c] sm:$0xf]
    %v239 = vld [vmem:[%s3 + $0x70] sm:$0xf]
    %v240 = vld [vmem:[%s3 + $0x74] sm:$0xf]
    %v241 = vld [vmem:[%s3 + $0x78] sm:$0xf]
    %v242 = vld [vmem:[%s3 + $0x7c] sm:$0xf]
    %v243 = vld [vmem:[#allocation8] sm:$0x1]
    %v245 = vlaneseq
    %v246 = vshrl.u32 %v245, 7
    %v247 = vsub.s32 0, %v246
    %v248 = vrot.slane %v243, %v247
    %v282 = vunpack.c.l.b16 %v211
    %v283 = vunpack.c.l.b16 %v212
    %v284 = vunpack.c.l.b16 %v213
    %v285 = vunpack.c.l.b16 %v214
    %v286 = vunpack.c.l.b16 %v215
    %v287 = vunpack.c.l.b16 %v216
    %v288 = vunpack.c.l.b16 %v217
    %v289 = vunpack.c.l.b16 %v218
    %v290 = vunpack.c.l.b16 %v219
    %v291 = vunpack.c.l.b16 %v220
    %v292 = vunpack.c.l.b16 %v221
    %v293 = vunpack.c.l.b16 %v222
    %v294 = vunpack.c.l.b16 %v223
    %v295 = vunpack.c.l.b16 %v224
    %v296 = vunpack.c.l.b16 %v225
    %v297 = vunpack.c.l.b16 %v226
    %v298 = vunpack.c.l.b16 %v227
    %v299 = vunpack.c.l.b16 %v228
    %v300 = vunpack.c.l.b16 %v229
    %v301 = vunpack.c.l.b16 %v230
    %v302 = vunpack.c.l.b16 %v231
    %v303 = vunpack.c.l.b16 %v232
    %v304 = vunpack.c.l.b16 %v233
    %v305 = vunpack.c.l.b16 %v234
    %v306 = vunpack.c.l.b16 %v235
    %v307 = vunpack.c.l.b16 %v236
    %v308 = vunpack.c.l.b16 %v237
    %v309 = vunpack.c.l.b16 %v238
    %v310 = vunpack.c.l.b16 %v239
    %v311 = vunpack.c.l.b16 %v240
    %v312 = vunpack.c.l.b16 %v241
    %v313 = vunpack.c.l.b16 %v242
    %v314 = vpack.c.b16 %v283, %v282
    %v315 = vpack.c.b16 %v285, %v284
    %v316 = vpack.c.b16 %v287, %v286
    %v317 = vpack.c.b16 %v289, %v288
    %v318 = vpack.c.b16 %v291, %v290
    %v319 = vpack.c.b16 %v293, %v292
    %v320 = vpack.c.b16 %v295, %v294
    %v321 = vpack.c.b16 %v297, %v296
    %v322 = vpack.c.b16 %v299, %v298
    %v323 = vpack.c.b16 %v301, %v300
    %v324 = vpack.c.b16 %v303, %v302
    %v325 = vpack.c.b16 %v305, %v304
    %v326 = vpack.c.b16 %v307, %v306
    %v327 = vpack.c.b16 %v309, %v308
    %v328 = vpack.c.b16 %v311, %v310
    %v329 = vpack.c.b16 %v313, %v312
    %346 = vmatprep.subr.bf16.mxu0 0
    %347 = vmatpush1.bf16.msra.mxu0 %v321
    %348 = vmatprep.subr.bf16.mxu0 0
    %349 = vmatpush1.bf16.msra.mxu0 %v320
    %350 = vmatprep.subr.bf16.mxu0 0
    %351 = vmatpush1.bf16.msra.mxu0 %v319
    %352 = vmatprep.subr.bf16.mxu0 0
    %353 = vmatpush1.bf16.msra.mxu0 %v318
    %354 = vmatprep.subr.bf16.mxu0 0
    %355 = vmatpush1.bf16.msra.mxu0 %v317
    %356 = vmatprep.subr.bf16.mxu0 0
    %357 = vmatpush1.bf16.msra.mxu0 %v316
    %358 = vmatprep.subr.bf16.mxu0 0
    %359 = vmatpush1.bf16.msra.mxu0 %v315
    %360 = vmatprep.subr.bf16.mxu0 0
    %361 = vmatpush1.bf16.msra.mxu0 %v314
    %362 = vmatprep.subr.bf16.mxu0 0
    %363 = vmatpush2.bf16.msra.mxu0 %v329
    %364 = vmatprep.subr.bf16.mxu0 0
    %365 = vmatpush2.bf16.msra.mxu0 %v328
    %366 = vmatprep.subr.bf16.mxu0 0
    %367 = vmatpush2.bf16.msra.mxu0 %v327
    %368 = vmatprep.subr.bf16.mxu0 0
    %369 = vmatpush2.bf16.msra.mxu0 %v326
    %370 = vmatprep.subr.bf16.mxu0 0
    %371 = vmatpush2.bf16.msra.mxu0 %v325
    %372 = vmatprep.subr.bf16.mxu0 0
    %373 = vmatpush2.bf16.msra.mxu0 %v324
    %374 = vmatprep.subr.bf16.mxu0 0
    %375 = vmatpush2.bf16.msra.mxu0 %v323
    %376 = vmatprep.subr.bf16.mxu0 0
    %377 = vmatpush2.bf16.msra.mxu0 %v322
    %378 = vmatprep.mubr.bf16.mxu0 %v210
    %379 = vmatmul.mubr.bf16.gmra.mxu0 %v209
    %v380 = vpop.f32.mrf.mxu0
    %v381 = vadd.f32 %v248, %v380
    %v382 = vpop.f32.mrf.mxu0
    %v383 = vpop.f32.mrf.mxu0
    %v384 = vpop.f32.mrf.mxu0
    %385 = vdwg.mxu0
    %v386 = vmax.f32 %v381, 0.0
    %v387 = vpack.c.bf16 %v386, %v386
    %v388 = vld [vmem:[%s5] sm:$0xf]
    %v389 = vld [vmem:[%s5 + $0x4] sm:$0xf]
    %v390 = vld [vmem:[%s5 + $0x8] sm:$0xf]
    %v391 = vld [vmem:[%s5 + $0xc] sm:$0xf]
    %v392 = vld [vmem:[%s5 + $0x10] sm:$0xf]
    %v393 = vld [vmem:[%s5 + $0x14] sm:$0xf]
    %v394 = vld [vmem:[%s5 + $0x18] sm:$0xf]
    %v395 = vld [vmem:[%s5 + $0x1c] sm:$0xf]
    %v396 = vld [vmem:[%s5 + $0x20] sm:$0xf]
    %v397 = vld [vmem:[%s5 + $0x24] sm:$0xf]
    %v398 = vld [vmem:[%s5 + $0x28] sm:$0xf]
    %v399 = vld [vmem:[%s5 + $0x2c] sm:$0xf]
    %v400 = vld [vmem:[%s5 + $0x30] sm:$0xf]
    %v401 = vld [vmem:[%s5 + $0x34] sm:$0xf]
    %v402 = vld [vmem:[%s5 + $0x38] sm:$0xf]
    %v403 = vld [vmem:[%s5 + $0x3c] sm:$0xf]
    %v404 = vld [vmem:[#allocation10] sm:$0x1]
    %v406 = vlaneseq
    %v407 = vshrl.u32 %v406, 7
    %v408 = vsub.s32 0, %v407
    %v409 = vrot.slane %v404, %v408
    %v427 = vunpack.c.l.b16 %v388
    %v428 = vunpack.c.l.b16 %v389
    %v429 = vunpack.c.l.b16 %v390
    %v430 = vunpack.c.l.b16 %v391
    %v431 = vunpack.c.l.b16 %v392
    %v432 = vunpack.c.l.b16 %v393
    %v433 = vunpack.c.l.b16 %v394
    %v434 = vunpack.c.l.b16 %v395
    %v435 = vunpack.c.l.b16 %v396
    %v436 = vunpack.c.l.b16 %v397
    %v437 = vunpack.c.l.b16 %v398
    %v438 = vunpack.c.l.b16 %v399
    %v439 = vunpack.c.l.b16 %v400
    %v440 = vunpack.c.l.b16 %v401
    %v441 = vunpack.c.l.b16 %v402
    %v442 = vunpack.c.l.b16 %v403
    %v443 = vpack.c.b16 %v428, %v427
    %v444 = vpack.c.b16 %v430, %v429
    %v445 = vpack.c.b16 %v432, %v431
    %v446 = vpack.c.b16 %v434, %v433
    %v447 = vpack.c.b16 %v436, %v435
    %v448 = vpack.c.b16 %v438, %v437
    %v449 = vpack.c.b16 %v440, %v439
    %v450 = vpack.c.b16 %v442, %v441
    %459 = vmatprep.subr.bf16.mxu0 0
    %460 = vmatpush1.bf16.msra.mxu0 %v450
    %461 = vmatprep.subr.bf16.mxu0 0
    %462 = vmatpush1.bf16.msra.mxu0 %v449
    %463 = vmatprep.subr.bf16.mxu0 0
    %464 = vmatpush1.bf16.msra.mxu0 %v448
    %465 = vmatprep.subr.bf16.mxu0 0
    %466 = vmatpush1.bf16.msra.mxu0 %v447
    %467 = vmatprep.subr.bf16.mxu0 0
    %468 = vmatpush1.bf16.msra.mxu0 %v446
    %469 = vmatprep.subr.bf16.mxu0 0
    %470 = vmatpush1.bf16.msra.mxu0 %v445
    %471 = vmatprep.subr.bf16.mxu0 0
    %472 = vmatpush1.bf16.msra.mxu0 %v444
    %473 = vmatprep.subr.bf16.mxu0 0
    %474 = vmatpush1.bf16.msra.mxu0 %v443
    %475 = vmatprep.subr.bf16.mxu0 0
    %476 = vmatpush2.bf16.msra.mxu0 0
    %477 = vmatprep.subr.bf16.mxu0 0
    %478 = vmatpush2.bf16.msra.mxu0 0
    %479 = vmatprep.subr.bf16.mxu0 0
    %480 = vmatpush2.bf16.msra.mxu0 0
    %481 = vmatprep.subr.bf16.mxu0 0
    %482 = vmatpush2.bf16.msra.mxu0 0
    %483 = vmatprep.subr.bf16.mxu0 0
    %484 = vmatpush2.bf16.msra.mxu0 0
    %485 = vmatprep.subr.bf16.mxu0 0
    %486 = vmatpush2.bf16.msra.mxu0 0
    %487 = vmatprep.subr.bf16.mxu0 0
    %488 = vmatpush2.bf16.msra.mxu0 0
    %489 = vmatprep.subr.bf16.mxu0 0
    %490 = vmatpush2.bf16.msra.mxu0 0
    %491 = vmatprep.mubr.bf16.mxu0 0
    %492 = vmatmul.mubr.bf16.gmra.mxu0 %v387
    %v493 = vpop.f32.mrf.mxu0
    %v494 = vadd.f32 %v409, %v493
    %v495 = vpop.f32.mrf.mxu0
    %v496 = vpop.f32.mrf.mxu0
    %v497 = vpop.f32.mrf.mxu0
    %498 = vdwg.mxu0
    %v499 = vmax.f32 %v494, 0.0
    %v500 = vpack.c.bf16 %v499, %v499
    %v501 = vld [vmem:[%s7] sm:$0xf]
    %v502 = vld [vmem:[%s7 + $0x4] sm:$0xf]
    %v503 = vld [vmem:[%s7 + $0x8] sm:$0xf]
    %v504 = vld [vmem:[%s7 + $0xc] sm:$0xf]
    %v505 = vld [vmem:[%s7 + $0x10] sm:$0xf]
    %v506 = vld [vmem:[%s7 + $0x14] sm:$0xf]
    %v507 = vld [vmem:[%s7 + $0x18] sm:$0xf]
    %v508 = vld [vmem:[%s7 + $0x1c] sm:$0xf]
    %v509 = vld [vmem:[#allocation11] sm:$0x1]
    %v511 = vlaneseq
    %v512 = vshrl.u32 %v511, 7
    %v513 = vsub.s32 0, %v512
    %v514 = vrot.slane %v509, %v513
    %v524 = vunpack.c.l.b16 %v501
    %v525 = vunpack.c.l.b16 %v502
    %v526 = vunpack.c.l.b16 %v503
    %v527 = vunpack.c.l.b16 %v504
    %v528 = vunpack.c.l.b16 %v505
    %v529 = vunpack.c.l.b16 %v506
    %v530 = vunpack.c.l.b16 %v507
    %v531 = vunpack.c.l.b16 %v508
    %v532 = vpack.c.b16 %v525, %v524
    %v533 = vpack.c.b16 %v527, %v526
    %v534 = vpack.c.b16 %v529, %v528
    %v535 = vpack.c.b16 %v531, %v530
    %vm540 = vcmask 523264
    %v542 = vsel %vm540, %v500, 0
    %544 = vmatprep.subr.bf16.mxu0 0
    %545 = vmatpush1.bf16.msra.mxu0 0
    %546 = vmatprep.subr.bf16.mxu0 0
    %547 = vmatpush1.bf16.msra.mxu0 0
    %548 = vmatprep.subr.bf16.mxu0 0
    %549 = vmatpush1.bf16.msra.mxu0 0
    %550 = vmatprep.subr.bf16.mxu0 0
    %551 = vmatpush1.bf16.msra.mxu0 0
    %552 = vmatprep.subr.bf16.mxu0 0
    %553 = vmatpush1.bf16.msra.mxu0 %v535
    %554 = vmatprep.subr.bf16.mxu0 0
    %555 = vmatpush1.bf16.msra.mxu0 %v534
    %556 = vmatprep.subr.bf16.mxu0 0
    %557 = vmatpush1.bf16.msra.mxu0 %v533
    %558 = vmatprep.subr.bf16.mxu0 0
    %559 = vmatpush1.bf16.msra.mxu0 %v532
    %560 = vmatprep.subr.bf16.mxu0 0
    %561 = vmatpush2.bf16.msra.mxu0 0
    %562 = vmatprep.subr.bf16.mxu0 0
    %563 = vmatpush2.bf16.msra.mxu0 0
    %564 = vmatprep.subr.bf16.mxu0 0
    %565 = vmatpush2.bf16.msra.mxu0 0
    %566 = vmatprep.subr.bf16.mxu0 0
    %567 = vmatpush2.bf16.msra.mxu0 0
    %568 = vmatprep.subr.bf16.mxu0 0
    %569 = vmatpush2.bf16.msra.mxu0 0
    %570 = vmatprep.subr.bf16.mxu0 0
    %571 = vmatpush2.bf16.msra.mxu0 0
    %572 = vmatprep.subr.bf16.mxu0 0
    %573 = vmatpush2.bf16.msra.mxu0 0
    %574 = vmatprep.subr.bf16.mxu0 0
    %575 = vmatpush2.bf16.msra.mxu0 0
    %576 = vmatprep.mubr.bf16.mxu0 0
    %577 = vmatmul.mubr.bf16.gmra.mxu0 %v542
    %v578 = vpop.f32.mrf.mxu0
    %v579 = vadd.f32 %v514, %v578
    %v580 = vpop.f32.mrf.mxu0
    %v581 = vpop.f32.mrf.mxu0
    %v582 = vpop.f32.mrf.mxu0
    %583 = vdwg.mxu0
    %v584 = vmax.f32 %v579, 0.0
    %v585 = vpack.c.bf16 %v584, %v584
    %v586 = vld [vmem:[%s9] sm:$0xf]
    %v587 = vld [vmem:[%s9 + $0x4] sm:$0xf]
    %v588 = vld [vmem:[%s9 + $0x8] sm:$0xf]
    %v589 = vld [vmem:[%s9 + $0xc] sm:$0xf]
    %v590 = vld [vmem:[%s10] sm:$0x1]
    %v592 = vlaneseq
    %v593 = vshrl.u32 %v592, 7
    %v594 = vsub.s32 0, %v593
    %v595 = vrot.slane %v590, %v594
    %v601 = vunpack.c.l.b16 %v586
    %v602 = vunpack.c.l.b16 %v587
    %v603 = vunpack.c.l.b16 %v588
    %v604 = vunpack.c.l.b16 %v589
    %v605 = vpack.c.b16 %v602, %v601
    %v606 = vpack.c.b16 %v604, %v603
    %vm609 = vcmask 261120
    %v611 = vsel %vm609, %v585, 0
    %613 = vmatprep.subr.bf16.mxu0 0
    %614 = vmatpush1.bf16.msra.mxu0 0
    %615 = vmatprep.subr.bf16.mxu0 0
    %616 = vmatpush1.bf16.msra.mxu0 0
    %617 = vmatprep.subr.bf16.mxu0 0
    %618 = vmatpush1.bf16.msra.mxu0 0
    %619 = vmatprep.subr.bf16.mxu0 0
    %620 = vmatpush1.bf16.msra.mxu0 0
    %621 = vmatprep.subr.bf16.mxu0 0
    %622 = vmatpush1.bf16.msra.mxu0 0
    %623 = vmatprep.subr.bf16.mxu0 0
    %624 = vmatpush1.bf16.msra.mxu0 0
    %625 = vmatprep.subr.bf16.mxu0 0
    %626 = vmatpush1.bf16.msra.mxu0 %v606
    %627 = vmatprep.subr.bf16.mxu0 0
    %628 = vmatpush1.bf16.msra.mxu0 %v605
    %629 = vmatprep.subr.bf16.mxu0 0
    %630 = vmatpush2.bf16.msra.mxu0 0
    %631 = vmatprep.subr.bf16.mxu0 0
    %632 = vmatpush2.bf16.msra.mxu0 0
    %633 = vmatprep.subr.bf16.mxu0 0
    %634 = vmatpush2.bf16.msra.mxu0 0
    %635 = vmatprep.subr.bf16.mxu0 0
    %636 = vmatpush2.bf16.msra.mxu0 0
    %637 = vmatprep.subr.bf16.mxu0 0
    %638 = vmatpush2.bf16.msra.mxu0 0
    %639 = vmatprep.subr.bf16.mxu0 0
    %640 = vmatpush2.bf16.msra.mxu0 0
    %641 = vmatprep.subr.bf16.mxu0 0
    %642 = vmatpush2.bf16.msra.mxu0 0
    %643 = vmatprep.subr.bf16.mxu0 0
    %644 = vmatpush2.bf16.msra.mxu0 0
    %645 = vmatprep.mubr.bf16.mxu0 0
    %646 = vmatmul.mubr.bf16.gmra.mxu0 %v611
    %v647 = vpop.f32.mrf.mxu0
    %v648 = vadd.f32 %v595, %v647
    %v649 = vpop.f32.mrf.mxu0
    %v650 = vpop.f32.mrf.mxu0
    %v651 = vpop.f32.mrf.mxu0
    %652 = vdwg.mxu0
    %v653 = vmax.f32 %v648, 0.0
    %v654 = vpack.c.bf16 %v653, %v653
    %v655 = vld [vmem:[#allocation13] sm:$0xf]
    %v656 = vld [vmem:[#allocation13 + $0x4] sm:$0xf]
    %v657 = vld [vmem:[%s12] sm:$0x1]
    %v659 = vlaneseq
    %v660 = vshrl.u32 %v659, 7
    %v661 = vsub.s32 0, %v660
    %v662 = vrot.slane %v657, %v661
    %v666 = vunpack.c.l.b16 %v655
    %v667 = vunpack.c.l.b16 %v656
    %v668 = vpack.c.b16 %v667, %v666
    %vm670 = vcmask 130048
    %v672 = vsel %vm670, %v654, 0
    %674 = vmatprep.subr.bf16.mxu0 0
    %675 = vmatpush1.bf16.msra.mxu0 0
    %676 = vmatprep.subr.bf16.mxu0 0
    %677 = vmatpush1.bf16.msra.mxu0 0
    %678 = vmatprep.subr.bf16.mxu0 0
    %679 = vmatpush1.bf16.msra.mxu0 0
    %680 = vmatprep.subr.bf16.mxu0 0
    %681 = vmatpush1.bf16.msra.mxu0 0
    %682 = vmatprep.subr.bf16.mxu0 0
    %683 = vmatpush1.bf16.msra.mxu0 0
    %684 = vmatprep.subr.bf16.mxu0 0
    %685 = vmatpush1.bf16.msra.mxu0 0
    %686 = vmatprep.subr.bf16.mxu0 0
    %687 = vmatpush1.bf16.msra.mxu0 0
    %688 = vmatprep.subr.bf16.mxu0 0
    %689 = vmatpush1.bf16.msra.mxu0 %v668
    %690 = vmatprep.subr.bf16.mxu0 0
    %691 = vmatpush2.bf16.msra.mxu0 0
    %692 = vmatprep.subr.bf16.mxu0 0
    %693 = vmatpush2.bf16.msra.mxu0 0
    %694 = vmatprep.subr.bf16.mxu0 0
    %695 = vmatpush2.bf16.msra.mxu0 0
    %696 = vmatprep.subr.bf16.mxu0 0
    %697 = vmatpush2.bf16.msra.mxu0 0
    %698 = vmatprep.subr.bf16.mxu0 0
    %699 = vmatpush2.bf16.msra.mxu0 0
    %700 = vmatprep.subr.bf16.mxu0 0
    %701 = vmatpush2.bf16.msra.mxu0 0
    %702 = vmatprep.subr.bf16.mxu0 0
    %703 = vmatpush2.bf16.msra.mxu0 0
    %704 = vmatprep.subr.bf16.mxu0 0
    %705 = vmatpush2.bf16.msra.mxu0 0
    %706 = vmatprep.mubr.bf16.mxu0 0
    %707 = vmatmul.mubr.bf16.gmra.mxu0 %v672
    %v708 = vpop.f32.mrf.mxu0
    %v709 = vadd.f32 %v662, %v708
    %v710 = vpop.f32.mrf.mxu0
    %v711 = vpop.f32.mrf.mxu0
    %v712 = vpop.f32.mrf.mxu0
    %713 = vdwg.mxu0
    %v714 = vsub.f32 0.0, %v709
    %v715 = vmul.f32 %v714, 1.442695
    %v716 = vpow.pop %v715
    %v717 = vadd.f32 %v716, 1.0
    %v718 = vrcp.pop %v717
    %719 = vst [vmem:[#allocation14] sm:$0xff] %v718
    // Predicated region
    $region82: #{tpu_custom_call.1} parent=1 // pred_check
      _
    $region83: #{tpu_custom_call.1} parent=1 // pred_check_branch
      %721 = sbr.rel (0) target = $region85
    $region84: #{tpu_custom_call.1} parent=1 // pred_region
      %s723 = ssub.s32 128, 128
      %724 = vsyncadd [#allocation4], %s723
      %s726 = sshll.u32 [#allocation14], 4
      %s727 = int_to_ptr.vmem [resolvable:$true] %s726
      %729 = dma.vmem_to_hbm [thread:$0]  %s727, 128, %s13, [#allocation4]
    $region85: #{tpu_custom_call.1} parent=1 // pred_fallthru
      _
    // Predicated region
    $region86: #{tpu_custom_call.1} parent=1 // pred_check
      _
    $region87: #{tpu_custom_call.1} parent=1 // pred_check_branch
      %731 = sbr.rel (0) target = $region89
    $region88: #{tpu_custom_call.1} parent=1 // pred_region
      %732 = dma.done [#allocation4], 128
    $region89: #{tpu_custom_call.1} parent=1 // pred_fallthru
      _
    %733 = vsyncpa [#allocation3], 1
    %734 = vsyncpa [#allocation6], 1
    %735 = vsyncpa [#allocation9], 1
    %736 = vsyncpa [#allocation12], 1
    %737 = vsyncpa [#allocation4], 1

</llo_original>
